<compile_context>
chip_gen: v5e
topology: v5e:2x2
jax: 0.10.0
libtpu: 0.0.40
codegen_flags: <defaults>
</compile_context>

<pallas_src>
import functools

import jax
import jax.numpy as jnp
from jax import lax
from jax.experimental import pallas as pl
from jax.experimental.pallas import tpu as pltpu


def _temporal_conv_kernel(x_ref, w_ref, b_ref, o_ref):
    """One lane-tile of the folded temporal conv.

    x_ref: (K*C_in, lane_tile) bf16  im2col slab (taps folded into sublanes)
    w_ref: (C_out, K*C_in)     bf16  folded conv weights
    b_ref: (C_out, 1)          f32   bias
    o_ref: (C_out, lane_tile)  f32   lane-dense output tile
    """
    acc = jnp.dot(w_ref[...], x_ref[...], preferred_element_type=jnp.float32)
    o_ref[...] = (acc + b_ref[...]).astype(o_ref.dtype)


def _pick_lane_packing(bn):
    """Pick (steps_per_block, lane_stride) so steps*stride is a multiple of 128.

    Packs as many time steps as possible into one 128-lane block when
    B*N <= 128 (e.g. B*N=50 -> 2 steps of 64 lanes each)."""
    if bn >= 128:
        return 1, ((bn + 127) // 128) * 128
    s = 128 // bn
    s = 1 << (s.bit_length() - 1)       # largest power of two <= s
    return s, 128 // s


def temporal_conv_layer(x, weight, bias, kernel_size, stride=1, padding="causal"):
    """Forward pass of TemporalConvLayer.

    x:      (B, C_in, T, N) float32   (NCHW, like the PyTorch module)
    weight: (C_out, C_in, K, 1) float32 (PyTorch Conv2d OIHW layout)
    bias:   (C_out,) float32
    returns (B, C_out, T_out, N) float32
    """
    B, C_in, T, N = x.shape
    K = kernel_size
    # Explicit check instead of a silent fall-through to VALID for unknown
    # strings ('valid' matches the PyTorch module's non-causal branch).
    assert padding in ("causal", "valid"), f"unsupported padding: {padding!r}"
    pad = K - 1 if padding == "causal" else 0
    assert T + pad >= K, "input too short for kernel"
    T_out = (T + pad - K) // stride + 1
    C_out = weight.shape[0]
    KC = K * C_in

    BN = B * N
    S, lane_stride = _pick_lane_packing(BN)     # S output steps per lane block
    block_lanes = S * lane_stride               # multiple of 128

    # ---------------- im2col fold at pack time -----------------------------
    # xp: (C_in, T+pad, B*N) with causal zeros at the start of time.
    xp = jnp.transpose(x, (1, 2, 0, 3)).reshape(C_in, T, BN)
    if pad > 0:
        xp = jnp.pad(xp, ((0, 0), (pad, 0), (0, 0)))
    # Stack the K (strided) time windows along channels: row k*C_in + ci.
    wins = jnp.concatenate(
        [xp[:, k:k + (T_out - 1) * stride + 1:stride, :] for k in range(K)],
        axis=0)                                  # (K*C_in, T_out, B*N)

    # ---------------- pack S output steps per lane block -------------------
    n_time_blocks = -(-T_out // S)
    max_tile_lanes = 2048                        # ~85% HBM roofline per review
    tile_blocks = max(1, min(n_time_blocks, max_tile_lanes // block_lanes))
    TB = -(-n_time_blocks // tile_blocks) * tile_blocks   # rounded to tiles
    Tp = TB * S
    slab = jnp.pad(wins, ((0, 0), (0, Tp - T_out), (0, lane_stride - BN)))
    slab = slab.reshape(KC, TB, S, lane_stride).reshape(KC, TB * block_lanes)
    slab = slab.astype(jnp.bfloat16)

    # Folded weights: W_fold[co, k*C_in + ci] = weight[co, ci, k, 0].
    w = jnp.transpose(weight[:, :, :, 0], (0, 2, 1)).reshape(C_out, KC)
    w = w.astype(jnp.bfloat16)
    b = bias.reshape(C_out, 1).astype(jnp.float32)

    lane_tile = tile_blocks * block_lanes        # multiple of 128
    total_lanes = TB * block_lanes
    grid = (total_lanes // lane_tile,)           # (1,) for small shapes

    out2d = pl.pallas_call(
        _temporal_conv_kernel,
        out_shape=jax.ShapeDtypeStruct((C_out, total_lanes), jnp.float32),
        grid=grid,
        in_specs=[
            pl.BlockSpec((KC, lane_tile), lambda i: (0, i)),
            pl.BlockSpec((C_out, KC), lambda i: (0, 0)),
            pl.BlockSpec((C_out, 1), lambda i: (0, 0)),
        ],
        out_specs=pl.BlockSpec((C_out, lane_tile), lambda i: (0, i)),
        compiler_params=pltpu.CompilerParams(
            dimension_semantics=("parallel",)),   # independent tiles -> megacore
    )(slab, w, b)

    # ---------------- unpack lanes back to (B, C_out, T_out, N) ------------
    out = out2d.reshape(C_out, TB, S, lane_stride).reshape(C_out, Tp, lane_stride)
    out = out[:, :T_out, :BN].reshape(C_out, T_out, B, N)
    return jnp.transpose(out, (2, 0, 1, 3))


def _ref_forward(x, weight, bias, K, pad):
    """Pure-JAX reference matching the PyTorch forward."""
    x_p = jnp.pad(x, ((0, 0), (0, 0), (pad, 0), (0, 0)))
    out = lax.conv_general_dilated(
        x_p, weight, window_strides=(1, 1), padding="VALID",
        dimension_numbers=("NCHW", "OIHW", "NCHW"))
    return out + bias[None, :, None, None]


if __name__ == "__main__":
    B, C_in, C_out, T, N, K = 2, 4, 8, 16, 25, 3

    key = jax.random.PRNGKey(0)
    kx, kw, kb = jax.random.split(key, 3)

    x = jax.random.normal(kx, (B, C_in, T, N), jnp.float32)

    # Deterministic Conv2d-style init: U(-1/sqrt(fan_in), 1/sqrt(fan_in))
    fan_in = C_in * K * 1
    bound = 1.0 / (fan_in ** 0.5)
    weight = jax.random.uniform(kw, (C_out, C_in, K, 1), jnp.float32, -bound, bound)
    bias = jax.random.uniform(kb, (C_out,), jnp.float32, -bound, bound)

    out = temporal_conv_layer(x, weight, bias, kernel_size=K)
    out = jax.block_until_ready(out)

    ref_f32 = _ref_forward(x, weight, bias, K, K - 1)
    assert out.shape == ref_f32.shape == (B, C_out, T, N), (out.shape, ref_f32.shape)

    # Tight check vs a reference fed the same bf16-rounded inputs (isolates
    # indexing / weight-ordering bugs from bf16 quantization error).
    xq = x.astype(jnp.bfloat16).astype(jnp.float32)
    wq = weight.astype(jnp.bfloat16).astype(jnp.float32)
    ref_q = _ref_forward(xq, wq, bias, K, K - 1)
    err_q = float(jnp.max(jnp.abs(out - ref_q)))
    assert err_q < 1e-3, err_q

    # Loose check vs the full-f32 reference (only bf16 input rounding differs).
    err_f = float(jnp.max(jnp.abs(out - ref_f32)))
    assert err_f < 5e-2, err_f

    print("KERNEL_OK")
</pallas_src>

<mosaic_0001>
module attributes {stable_mosaic.version = 11 : i64} {
  func.func @_temporal_conv_kernel(%arg0: i32, %arg1: memref<12x1024xbf16, #tpu.memory_space<vmem>>, %arg2: memref<8x12xbf16, #tpu.memory_space<vmem>>, %arg3: memref<8x1xf32, #tpu.memory_space<vmem>>, %arg4: memref<8x1024xf32, #tpu.memory_space<vmem>>) attributes {dimension_semantics = [#tpu.dimension_semantics<parallel>], iteration_bounds = array<i64: 1>, scalar_prefetch = 0 : i64, scratch_operands = 0 : i64, tpu.core_type = #tpu.core_type<tc>, window_params = [{transform_indices = @transform_0, window_bounds = array<i64: 12, 1024>}, {pipeline_mode = #tpu.pipeline_mode<synchronous>, transform_indices = @transform_1, window_bounds = array<i64: 8, 12>}, {pipeline_mode = #tpu.pipeline_mode<synchronous>, transform_indices = @transform_2, window_bounds = array<i64: 8, 1>}, {transform_indices = @transform_3, window_bounds = array<i64: 8, 1024>}]} {
    %c0 = arith.constant 0 : index
    %c0_0 = arith.constant 0 : index
    %0 = vector.load %arg2[%c0, %c0_0] : memref<8x12xbf16, #tpu.memory_space<vmem>>, vector<8x12xbf16>
    %c0_1 = arith.constant 0 : index
    %c0_2 = arith.constant 0 : index
    %1 = vector.load %arg1[%c0_1, %c0_2] : memref<12x1024xbf16, #tpu.memory_space<vmem>>, vector<12x1024xbf16>
    %cst = arith.constant dense<0.000000e+00> : vector<8x1024xf32>
    %2 = tpu.matmul %0, %1, %cst {dimension_numbers = #tpu.dot_dimension_numbers<[1], [0], [0], [1], [0, 0, 1, 1], [], []>} : vector<8x12xbf16>, vector<12x1024xbf16>, vector<8x1024xf32> -> vector<8x1024xf32>
    %c0_3 = arith.constant 0 : index
    %c0_4 = arith.constant 0 : index
    %3 = vector.load %arg3[%c0_3, %c0_4] : memref<8x1xf32, #tpu.memory_space<vmem>>, vector<8x1xf32>
    %4 = vector.broadcast %3 : vector<8x1xf32> to vector<8x1024xf32>
    %5 = arith.addf %2, %4 : vector<8x1024xf32>
    %c0_5 = arith.constant 0 : index
    %c0_6 = arith.constant 0 : index
    %6 = vector.load %arg4[%c0_5, %c0_6] : memref<8x1024xf32, #tpu.memory_space<vmem>>, vector<8x1024xf32>
    tpu.vector_store %arg4[%c0_5, %c0_6], %5 {strides = array<i32>} : memref<8x1024xf32, #tpu.memory_space<vmem>>, vector<8x1024xf32>,
    return
  }
  func.func @transform_0(%arg0: i32) -> (i32, i32) {
    %c0_i32 = arith.constant 0 : i32
    %c0_i32_0 = arith.constant 0 : i32
    return %c0_i32, %arg0 : i32, i32
  }
  func.func @transform_1(%arg0: i32) -> (i32, i32) {
    %c0_i32 = arith.constant 0 : i32
    %c0_i32_0 = arith.constant 0 : i32
    %c0_i32_1 = arith.constant 0 : i32
    return %c0_i32, %c0_i32_0 : i32, i32
  }
  func.func @transform_2(%arg0: i32) -> (i32, i32) {
    %c0_i32 = arith.constant 0 : i32
    %c0_i32_0 = arith.constant 0 : i32
    %c0_i32_1 = arith.constant 0 : i32
    return %c0_i32, %c0_i32_0 : i32, i32
  }
  func.func @transform_3(%arg0: i32) -> (i32, i32) {
    %c0_i32 = arith.constant 0 : i32
    %c0_i32_0 = arith.constant 0 : i32
    return %c0_i32, %arg0 : i32, i32
  }
}

</mosaic_0001>

<llo_original>
// kernel: tpu_custom_call.1
$region0: #{tpu_custom_call.1}
  #allocation0 [shape = 'u32[]', space=smem, size = 0x4, offset = 0x4, fixed_abs, tag = 'smem constant byte address 0x4 - core index']
  #allocation1 [shape = 'u32[72,128]{1,0:T(1,128)}', space=vmem, size = 0x9000, scoped, tag = 'internal scratch']
  %s0 = inlined_call_operand.hbm [shape: bf16[12,1024], index: 0, kind: input, shape index: {}]
  %s1 = inlined_call_operand.vmem [shape: bf16[8,12], index: 1, kind: input, shape index: {}]
  %s2 = inlined_call_operand.vmem [shape: f32[8,1], index: 2, kind: input, shape index: {}]
  %s3 = inlined_call_operand.hbm [shape: f32[8,1024], index: 3, kind: output, shape index: {}]
  %s4 = sld [smem:[#allocation0]]
  $region26: #{tpu_custom_call.1} parent=0
    _
  %s6 = ssub.s32 1, %s4
  %s7 = scalar_select 0, %s6, %s4
  $region1: #{tpu_custom_call.1} parent=0
    #allocation2 [shape = 'u8[32768]{0}', space=vmem, size = 0x8000, scoped, tag = 'input window, operand 0, single buffered']
    #allocation3 [shape = 's32[1]{0}', space=sflag, size = 0x4, scoped, tag = 'scoped memory for tpu_custom_call.1']
    #allocation4 [shape = 's32[1]{0}', space=sflag, size = 0x4, scoped, tag = 'scoped memory for tpu_custom_call.1']
    #allocation5 [shape = 'u8[32768]{0}', space=vmem, size = 0x8000, scoped, tag = 'output window, operand 0, single buffered']
    %8 = vsyncpa [#allocation3], 0
    %9 = vsyncpa [#allocation4], 0
    // Predicated region
    $region2: #{tpu_custom_call.1} parent=1 // pred_check
      _
    $region3: #{tpu_custom_call.1} parent=1 // pred_check_branch
      %11 = sbr.rel (0) target = $region5
    $region4: #{tpu_custom_call.1} parent=1 // pred_region
      %13 = vsyncadd [#allocation3], 0
      %s14 = sshll.u32 %s0, 4
      %s15 = int_to_ptr.hbm [resolvable:$true] %s14
      %s16 = sshll.u32 [#allocation2], 4
      %s17 = int_to_ptr.vmem [resolvable:$true] %s16
      %22 = dma.hbm_to_vmem [thread:$0]  %s15, 1024, %s17, [#allocation3], 512, 512, 32
    $region5: #{tpu_custom_call.1} parent=1 // pred_fallthru
      _
    // Predicated region
    $region6: #{tpu_custom_call.1} parent=1 // pred_check
      _
    $region7: #{tpu_custom_call.1} parent=1 // pred_check_branch
      %24 = sbr.rel (0) target = $region9
    $region8: #{tpu_custom_call.1} parent=1 // pred_region
      _
    $region9: #{tpu_custom_call.1} parent=1 // pred_fallthru
      _
    // Predicated region
    $region10: #{tpu_custom_call.1} parent=1 // pred_check
      _
    $region11: #{tpu_custom_call.1} parent=1 // pred_check_branch
      %26 = sbr.rel (0) target = $region13
    $region12: #{tpu_custom_call.1} parent=1 // pred_region
      _
    $region13: #{tpu_custom_call.1} parent=1 // pred_fallthru
      _
    // Predicated region
    $region14: #{tpu_custom_call.1} parent=1 // pred_check
      _
    $region15: #{tpu_custom_call.1} parent=1 // pred_check_branch
      %28 = sbr.rel (0) target = $region17
    $region16: #{tpu_custom_call.1} parent=1 // pred_region
      %30 = dma.done [#allocation3], 1024
    $region17: #{tpu_custom_call.1} parent=1 // pred_fallthru
      _
    %v32 = vld [vmem:[%s1] sm:$0xf]
    %v33 = vld [vmem:[#allocation2] sm:$0xff]
    %v34 = vld [vmem:[#allocation2 + $0x8] sm:$0xff]
    %v35 = vld [vmem:[#allocation2 + $0x10] sm:$0xff]
    %v36 = vld [vmem:[#allocation2 + $0x18] sm:$0xff]
    %v37 = vld [vmem:[#allocation2 + $0x20] sm:$0x33]
    %v38 = vld [vmem:[#allocation2 + $0x28] sm:$0x33]
    %v39 = vld [vmem:[#allocation2 + $0x30] sm:$0x33]
    %v40 = vld [vmem:[#allocation2 + $0x38] sm:$0x33]
    %v41 = vld [vmem:[%s2] sm:$0xff]
    %43 = vset.pattern.permute.xlu0 0
    %44 = vperm.xlu0 %43, %v41
    %v45 = vpop.permute.xlu0 %44
    %v55 = vunpack.c.l.b16 %v33
    %v56 = vunpack.c.h.b16 %v33
    %v57 = vunpack.c.l.b16 %v34
    %v58 = vunpack.c.h.b16 %v34
    %v59 = vunpack.c.l.b16 %v35
    %v60 = vunpack.c.h.b16 %v35
    %v61 = vunpack.c.l.b16 %v36
    %v62 = vunpack.c.h.b16 %v36
    %v63 = vunpack.c.l.b16 %v37
    %v64 = vunpack.c.h.b16 %v37
    %v65 = vunpack.c.l.b16 %v38
    %v66 = vunpack.c.h.b16 %v38
    %v67 = vunpack.c.l.b16 %v39
    %v68 = vunpack.c.h.b16 %v39
    %v69 = vunpack.c.l.b16 %v40
    %v70 = vunpack.c.h.b16 %v40
    %v71 = vpack.c.b16 %v63, %v55
    %v72 = vpack.c.b16 %v64, %v56
    %v73 = vpack.c.b16 %v65, %v57
    %v74 = vpack.c.b16 %v66, %v58
    %v75 = vpack.c.b16 %v67, %v59
    %v76 = vpack.c.b16 %v68, %v60
    %v77 = vpack.c.b16 %v69, %v61
    %v78 = vpack.c.b16 %v70, %v62
    %vm79 = vcmask 97280
    %v81 = vsel %vm79, %v32, 0
    %vm83 = vcmask 1045504
    %v85 = vsel %vm83, %v71, 0
    %v88 = vsel %vm83, %v72, 0
    %v91 = vsel %vm83, %v73, 0
    %v94 = vsel %vm83, %v74, 0
    %v97 = vsel %vm83, %v75, 0
    %v100 = vsel %vm83, %v76, 0
    %v103 = vsel %vm83, %v77, 0
    %v106 = vsel %vm83, %v78, 0
    %108 = vmatpush.bf16.msra.mxu0 0
    %109 = vmatpush.bf16.msra.mxu0 0
    %110 = vmatpush.bf16.msra.mxu0 0
    %111 = vmatpush.bf16.msra.mxu0 0
    %112 = vmatpush.bf16.msra.mxu0 0
    %113 = vmatpush.bf16.msra.mxu0 0
    %114 = vmatpush.bf16.msra.mxu0 0
    %115 = vmatpush.bf16.msra.mxu0 %v85
    %116 = vmatmul.bf16.gmra.mxu0 %v81
    %v117 = vpop.f32.mrf.mxu0
    %v118 = vadd.f32 %v45, %v117
    %v119 = vpop.f32.mrf.mxu0
    %120 = vdwg.mxu0
    %121 = vmatpush.bf16.msra.mxu0 0
    %122 = vmatpush.bf16.msra.mxu0 0
    %123 = vmatpush.bf16.msra.mxu0 0
    %124 = vmatpush.bf16.msra.mxu0 0
    %125 = vmatpush.bf16.msra.mxu0 0
    %126 = vmatpush.bf16.msra.mxu0 0
    %127 = vmatpush.bf16.msra.mxu0 0
    %128 = vmatpush.bf16.msra.mxu0 %v88
    %129 = vmatmul.bf16.gmra.mxu0 %v81
    %v130 = vpop.f32.mrf.mxu0
    %v131 = vadd.f32 %v45, %v130
    %v132 = vpop.f32.mrf.mxu0
    %133 = vdwg.mxu0
    %134 = vmatpush.bf16.msra.mxu0 0
    %135 = vmatpush.bf16.msra.mxu0 0
    %136 = vmatpush.bf16.msra.mxu0 0
    %137 = vmatpush.bf16.msra.mxu0 0
    %138 = vmatpush.bf16.msra.mxu0 0
    %139 = vmatpush.bf16.msra.mxu0 0
    %140 = vmatpush.bf16.msra.mxu0 0
    %141 = vmatpush.bf16.msra.mxu0 %v91
    %142 = vmatmul.bf16.gmra.mxu0 %v81
    %v143 = vpop.f32.mrf.mxu0
    %v144 = vadd.f32 %v45, %v143
    %v145 = vpop.f32.mrf.mxu0
    %146 = vdwg.mxu0
    %147 = vmatpush.bf16.msra.mxu0 0
    %148 = vmatpush.bf16.msra.mxu0 0
    %149 = vmatpush.bf16.msra.mxu0 0
    %150 = vmatpush.bf16.msra.mxu0 0
    %151 = vmatpush.bf16.msra.mxu0 0
    %152 = vmatpush.bf16.msra.mxu0 0
    %153 = vmatpush.bf16.msra.mxu0 0
    %154 = vmatpush.bf16.msra.mxu0 %v94
    %155 = vmatmul.bf16.gmra.mxu0 %v81
    %v156 = vpop.f32.mrf.mxu0
    %v157 = vadd.f32 %v45, %v156
    %v158 = vpop.f32.mrf.mxu0
    %159 = vdwg.mxu0
    %160 = vmatpush.bf16.msra.mxu0 0
    %161 = vmatpush.bf16.msra.mxu0 0
    %162 = vmatpush.bf16.msra.mxu0 0
    %163 = vmatpush.bf16.msra.mxu0 0
    %164 = vmatpush.bf16.msra.mxu0 0
    %165 = vmatpush.bf16.msra.mxu0 0
    %166 = vmatpush.bf16.msra.mxu0 0
    %167 = vmatpush.bf16.msra.mxu0 %v97
    %168 = vmatmul.bf16.gmra.mxu0 %v81
    %v169 = vpop.f32.mrf.mxu0
    %v170 = vadd.f32 %v45, %v169
    %v171 = vpop.f32.mrf.mxu0
    %172 = vdwg.mxu0
    %173 = vmatpush.bf16.msra.mxu0 0
    %174 = vmatpush.bf16.msra.mxu0 0
    %175 = vmatpush.bf16.msra.mxu0 0
    %176 = vmatpush.bf16.msra.mxu0 0
    %177 = vmatpush.bf16.msra.mxu0 0
    %178 = vmatpush.bf16.msra.mxu0 0
    %179 = vmatpush.bf16.msra.mxu0 0
    %180 = vmatpush.bf16.msra.mxu0 %v100
    %181 = vmatmul.bf16.gmra.mxu0 %v81
    %v182 = vpop.f32.mrf.mxu0
    %v183 = vadd.f32 %v45, %v182
    %v184 = vpop.f32.mrf.mxu0
    %185 = vdwg.mxu0
    %186 = vmatpush.bf16.msra.mxu0 0
    %187 = vmatpush.bf16.msra.mxu0 0
    %188 = vmatpush.bf16.msra.mxu0 0
    %189 = vmatpush.bf16.msra.mxu0 0
    %190 = vmatpush.bf16.msra.mxu0 0
    %191 = vmatpush.bf16.msra.mxu0 0
    %192 = vmatpush.bf16.msra.mxu0 0
    %193 = vmatpush.bf16.msra.mxu0 %v103
    %194 = vmatmul.bf16.gmra.mxu0 %v81
    %v195 = vpop.f32.mrf.mxu0
    %v196 = vadd.f32 %v45, %v195
    %v197 = vpop.f32.mrf.mxu0
    %198 = vdwg.mxu0
    %199 = vmatpush.bf16.msra.mxu0 0
    %200 = vmatpush.bf16.msra.mxu0 0
    %201 = vmatpush.bf16.msra.mxu0 0
    %202 = vmatpush.bf16.msra.mxu0 0
    %203 = vmatpush.bf16.msra.mxu0 0
    %204 = vmatpush.bf16.msra.mxu0 0
    %205 = vmatpush.bf16.msra.mxu0 0
    %206 = vmatpush.bf16.msra.mxu0 %v106
    %207 = vmatmul.bf16.gmra.mxu0 %v81
    %v208 = vpop.f32.mrf.mxu0
    %v209 = vadd.f32 %v45, %v208
    %v210 = vpop.f32.mrf.mxu0
    %211 = vdwg.mxu0
    %212 = vst [vmem:[#allocation5] sm:$0xff] %v118
    %213 = vst [vmem:[#allocation5 + $0x8] sm:$0xff] %v131
    %214 = vst [vmem:[#allocation5 + $0x10] sm:$0xff] %v144
    %215 = vst [vmem:[#allocation5 + $0x18] sm:$0xff] %v157
    %216 = vst [vmem:[#allocation5 + $0x20] sm:$0xff] %v170
    %217 = vst [vmem:[#allocation5 + $0x28] sm:$0xff] %v183
    %218 = vst [vmem:[#allocation5 + $0x30] sm:$0xff] %v196
    %219 = vst [vmem:[#allocation5 + $0x38] sm:$0xff] %v209
    // Predicated region
    $region18: #{tpu_custom_call.1} parent=1 // pred_check
      _
    $region19: #{tpu_custom_call.1} parent=1 // pred_check_branch
      %221 = sbr.rel (0) target = $region21
    $region20: #{tpu_custom_call.1} parent=1 // pred_region
      %223 = vsyncadd [#allocation4], 0
      %s225 = sshll.u32 [#allocation5], 4
      %s226 = int_to_ptr.vmem [resolvable:$true] %s225
      %s227 = sshll.u32 %s3, 4
      %s228 = int_to_ptr.hbm [resolvable:$true] %s227
      %230 = dma.vmem_to_hbm [thread:$0]  %s226, 1024, %s228, [#allocation4]
    $region21: #{tpu_custom_call.1} parent=1 // pred_fallthru
      _
    // Predicated region
    $region22: #{tpu_custom_call.1} parent=1 // pred_check
      _
    $region23: #{tpu_custom_call.1} parent=1 // pred_check_branch
      %232 = sbr.rel (0) target = $region25
    $region24: #{tpu_custom_call.1} parent=1 // pred_region
      %234 = dma.done [#allocation4], 1024
    $region25: #{tpu_custom_call.1} parent=1 // pred_fallthru
      _
    %235 = vsyncpa [#allocation3], 1
    %236 = vsyncpa [#allocation4], 1

</llo_original>
